<compile_context>
chip_gen: v7x
topology: tpu7x:2x2x1
jax: 0.10.0
libtpu: 0.0.40
codegen_flags: <defaults>
</compile_context>

<pallas_src>
import functools

import jax
import jax.numpy as jnp
from jax.experimental import pallas as pl
from jax.experimental.pallas import tpu as pltpu


def _round_up(x: int, m: int) -> int:
    return (x + m - 1) // m * m


def _mixing_kernel(verb_ref, noun_ref, ent1_ref, ent2_ref, wt_ref, b_ref,
                   out_ref):
    d_topic = verb_ref.shape[1]
    d_noun = noun_ref.shape[1]
    d_ent = ent1_ref.shape[1]
    hi = jax.lax.Precision.HIGHEST

    # cat([verb, noun, ent1+ent2]) @ W^T  ==  sum of three matmuls against
    # static row-slices of W^T.  W^T is pinned (constant index_map), so these
    # slices are plain VMEM loads — no scratch store/reload round trip.
    acc = jnp.dot(verb_ref[...].astype(jnp.float32),
                  wt_ref[0:d_topic, :],
                  preferred_element_type=jnp.float32, precision=hi)
    acc += jnp.dot(noun_ref[...].astype(jnp.float32),
                   wt_ref[d_topic:d_topic + d_noun, :],
                   preferred_element_type=jnp.float32, precision=hi)
    ent = ent1_ref[...].astype(jnp.float32) + ent2_ref[...].astype(jnp.float32)
    acc += jnp.dot(ent,
                   wt_ref[d_topic + d_noun:d_topic + d_noun + d_ent, :],
                   preferred_element_type=jnp.float32, precision=hi)
    acc += b_ref[...]                       # [1, d_mix] broadcasts over rows
    out_ref[...] = jnp.maximum(acc, 0.0).astype(out_ref.dtype)


def prepare_params(weight, bias):
    """One-time parameter prep (call OUTSIDE the per-step hot path).

    weight: [d_mix, d_in]  (PyTorch nn.Linear layout);  bias: [d_mix].
    Returns (w_t [d_in, d_mix] f32, b [1, d_mix] f32) — unpadded, so kernel
    output needs no lane padding nor a trailing slice.
    """
    w_t = jnp.asarray(weight, jnp.float32).T
    b = jnp.asarray(bias, jnp.float32).reshape(1, -1)
    return w_t, b


@functools.partial(jax.jit, static_argnames=("batch_tile", "min_steps"))
def mixing_layer_concat(input_verb, input_noun, input_ent1, input_ent2,
                        w_t, b, *, batch_tile=2048, min_steps=2):
    B, d_topic = input_verb.shape
    d_noun = input_noun.shape[1]
    d_ent = input_ent1.shape[1]
    d_in, d_mix = w_t.shape
    assert d_in == d_topic + d_noun + d_ent
    assert b.shape == (1, d_mix)

    # Tile choice: as large as possible (big tiles hide the ~0.35 us/step
    # pipeline overhead; 2048 rows double-buffered is only a few MiB, fine
    # even on v7x's 64 MiB VMEM), while keeping >= min_steps grid steps when
    # B allows so the "parallel" axis can shard across v7x's two TensorCores.
    batch_tile = max(8, _round_up(batch_tile, 8))
    block_b = min(batch_tile, max(8, _round_up(pl.cdiv(B, max(1, min_steps)), 8)))
    if block_b >= B:
        block_b = B            # single full-array block (any B is legal here)
    grid = (pl.cdiv(B, block_b),)

    row = lambda feat: pl.BlockSpec((block_b, feat), lambda i: (i, 0))
    pinned = lambda shape: pl.BlockSpec(shape, lambda i: (0, 0))
    # (pipeline_mode=pl.Buffered(1) on the pinned specs would also drop their
    #  dead second buffer — ~33 KB — left at default for portability.)

    return pl.pallas_call(
        _mixing_kernel,
        out_shape=jax.ShapeDtypeStruct((B, d_mix), jnp.float32),
        grid=grid,
        in_specs=[
            row(d_topic),              # verb  (tiled over batch)
            row(d_noun),               # noun
            row(d_ent),                # ent1
            row(d_ent),                # ent2
            pinned((d_in, d_mix)),     # W^T, VMEM-resident across grid steps
            pinned((1, d_mix)),        # bias, VMEM-resident
        ],
        out_specs=row(d_mix),          # unpadded: no write amplification/slice
        compiler_params=pltpu.CompilerParams(
            dimension_semantics=("parallel",),   # megacore split on v7x
        ),
    )(input_verb, input_noun, input_ent1, input_ent2, w_t, b)


def _xavier_uniform(key, shape, dtype=jnp.float32):
    fan_out, fan_in = shape
    limit = jnp.sqrt(6.0 / (fan_in + fan_out))
    return jax.random.uniform(key, shape, dtype, minval=-limit, maxval=limit)


if __name__ == "__main__":
    # Small shapes consistent with the module.
    B = 8
    d_topic, d_noun_hidden, d_ent, d_mix = 16, 32, 16, 32
    d_in = d_topic + d_noun_hidden + d_ent

    key = jax.random.PRNGKey(0)
    kv, kn, ke1, ke2, kw = jax.random.split(key, 5)

    input_verb = jax.random.normal(kv, (B, d_topic), jnp.float32)
    input_noun = jax.random.normal(kn, (B, d_noun_hidden), jnp.float32)
    input_ent1 = jax.random.normal(ke1, (B, d_ent), jnp.float32)
    input_ent2 = jax.random.normal(ke2, (B, d_ent), jnp.float32)

    weight = _xavier_uniform(kw, (d_mix, d_in))     # nn.Linear weight layout
    bias = jnp.zeros((d_mix,), jnp.float32)         # constant 0.0 init

    # One-time parameter prep (kept out of the per-call hot path).
    w_t, b = prepare_params(weight, bias)

    out = mixing_layer_concat(input_verb, input_noun, input_ent1, input_ent2,
                              w_t, b)
    out = jax.block_until_ready(out)

    # Pure-JAX reference (same math as the PyTorch module).
    cat = jnp.concatenate([input_verb, input_noun, input_ent1 + input_ent2],
                          axis=1)
    ref = jnp.maximum(cat @ weight.T + bias, 0.0)
    assert out.shape == (B, d_mix)
    assert jnp.allclose(out, ref, atol=1e-5, rtol=1e-5)

    print("KERNEL_OK")
</pallas_src>

<mosaic_0001>
module attributes {stable_mosaic.version = 11 : i64} {
  func.func @_mixing_kernel(%arg0: i32, %arg1: memref<8x16xf32, #tpu.memory_space<vmem>>, %arg2: memref<8x32xf32, #tpu.memory_space<vmem>>, %arg3: memref<8x16xf32, #tpu.memory_space<vmem>>, %arg4: memref<8x16xf32, #tpu.memory_space<vmem>>, %arg5: memref<64x32xf32, #tpu.memory_space<vmem>>, %arg6: memref<1x32xf32, #tpu.memory_space<vmem>>, %arg7: memref<8x32xf32, #tpu.memory_space<vmem>>) attributes {dimension_semantics = [#tpu.dimension_semantics<parallel>], iteration_bounds = array<i64: 1>, scalar_prefetch = 0 : i64, scratch_operands = 0 : i64, tpu.core_type = #tpu.core_type<tc>, window_params = [{transform_indices = @transform_0, window_bounds = array<i64: 8, 16>}, {transform_indices = @transform_1, window_bounds = array<i64: 8, 32>}, {transform_indices = @transform_2, window_bounds = array<i64: 8, 16>}, {transform_indices = @transform_3, window_bounds = array<i64: 8, 16>}, {pipeline_mode = #tpu.pipeline_mode<synchronous>, transform_indices = @transform_4, window_bounds = array<i64: 64, 32>}, {pipeline_mode = #tpu.pipeline_mode<synchronous>, transform_indices = @transform_5, window_bounds = array<i64: 1, 32>}, {transform_indices = @transform_6, window_bounds = array<i64: 8, 32>}]} {
    %c0 = arith.constant 0 : index
    %c0_0 = arith.constant 0 : index
    %0 = vector.load %arg1[%c0, %c0_0] : memref<8x16xf32, #tpu.memory_space<vmem>>, vector<8x16xf32>
    %c0_1 = arith.constant 0 : index
    %c0_2 = arith.constant 0 : index
    %1 = vector.load %arg5[%c0_1, %c0_2] : memref<64x32xf32, #tpu.memory_space<vmem>>, vector<16x32xf32>
    %cst = arith.constant dense<0.000000e+00> : vector<8x32xf32>
    %2 = tpu.matmul %0, %1, %cst {dimension_numbers = #tpu.dot_dimension_numbers<[1], [0], [0], [1], [0, 0, 1, 1], [], []>, precision = #tpu.contract_precision<fp32>} : vector<8x16xf32>, vector<16x32xf32>, vector<8x32xf32> -> vector<8x32xf32>
    %c0_3 = arith.constant 0 : index
    %c0_4 = arith.constant 0 : index
    %3 = vector.load %arg2[%c0_3, %c0_4] : memref<8x32xf32, #tpu.memory_space<vmem>>, vector<8x32xf32>
    %c16 = arith.constant 16 : index
    %c0_5 = arith.constant 0 : index
    %4 = vector.load %arg5[%c16, %c0_5] : memref<64x32xf32, #tpu.memory_space<vmem>>, vector<32x32xf32>
    %cst_6 = arith.constant dense<0.000000e+00> : vector<8x32xf32>
    %5 = tpu.matmul %3, %4, %cst_6 {dimension_numbers = #tpu.dot_dimension_numbers<[1], [0], [0], [1], [0, 0, 1, 1], [], []>, precision = #tpu.contract_precision<fp32>} : vector<8x32xf32>, vector<32x32xf32>, vector<8x32xf32> -> vector<8x32xf32>
    %6 = arith.addf %2, %5 : vector<8x32xf32>
    %c0_7 = arith.constant 0 : index
    %c0_8 = arith.constant 0 : index
    %7 = vector.load %arg3[%c0_7, %c0_8] : memref<8x16xf32, #tpu.memory_space<vmem>>, vector<8x16xf32>
    %c0_9 = arith.constant 0 : index
    %c0_10 = arith.constant 0 : index
    %8 = vector.load %arg4[%c0_9, %c0_10] : memref<8x16xf32, #tpu.memory_space<vmem>>, vector<8x16xf32>
    %9 = arith.addf %7, %8 : vector<8x16xf32>
    %c48 = arith.constant 48 : index
    %c0_11 = arith.constant 0 : index
    %10 = vector.load %arg5[%c48, %c0_11] : memref<64x32xf32, #tpu.memory_space<vmem>>, vector<16x32xf32>
    %cst_12 = arith.constant dense<0.000000e+00> : vector<8x32xf32>
    %11 = tpu.matmul %9, %10, %cst_12 {dimension_numbers = #tpu.dot_dimension_numbers<[1], [0], [0], [1], [0, 0, 1, 1], [], []>, precision = #tpu.contract_precision<fp32>} : vector<8x16xf32>, vector<16x32xf32>, vector<8x32xf32> -> vector<8x32xf32>
    %12 = arith.addf %6, %11 : vector<8x32xf32>
    %c0_13 = arith.constant 0 : index
    %c0_14 = arith.constant 0 : index
    %13 = vector.load %arg6[%c0_13, %c0_14] : memref<1x32xf32, #tpu.memory_space<vmem>>, vector<1x32xf32>
    %14 = vector.broadcast %13 : vector<1x32xf32> to vector<8x32xf32>
    %15 = arith.addf %12, %14 : vector<8x32xf32>
    %cst_15 = arith.constant 0.000000e+00 : f32
    %16 = vector.broadcast %cst_15 : f32 to vector<8x32xf32>
    %17 = arith.maximumf %15, %16 : vector<8x32xf32>
    %c0_16 = arith.constant 0 : index
    %c0_17 = arith.constant 0 : index
    %18 = vector.load %arg7[%c0_16, %c0_17] : memref<8x32xf32, #tpu.memory_space<vmem>>, vector<8x32xf32>
    tpu.vector_store %arg7[%c0_16, %c0_17], %17 {strides = array<i32>} : memref<8x32xf32, #tpu.memory_space<vmem>>, vector<8x32xf32>,
    return
  }
  func.func @transform_0(%arg0: i32) -> (i32, i32) {
    %c0_i32 = arith.constant 0 : i32
    %c0_i32_0 = arith.constant 0 : i32
    return %arg0, %c0_i32 : i32, i32
  }
  func.func @transform_1(%arg0: i32) -> (i32, i32) {
    %c0_i32 = arith.constant 0 : i32
    %c0_i32_0 = arith.constant 0 : i32
    return %arg0, %c0_i32 : i32, i32
  }
  func.func @transform_2(%arg0: i32) -> (i32, i32) {
    %c0_i32 = arith.constant 0 : i32
    %c0_i32_0 = arith.constant 0 : i32
    return %arg0, %c0_i32 : i32, i32
  }
  func.func @transform_3(%arg0: i32) -> (i32, i32) {
    %c0_i32 = arith.constant 0 : i32
    %c0_i32_0 = arith.constant 0 : i32
    return %arg0, %c0_i32 : i32, i32
  }
  func.func @transform_4(%arg0: i32) -> (i32, i32) {
    %c0_i32 = arith.constant 0 : i32
    %c0_i32_0 = arith.constant 0 : i32
    %c0_i32_1 = arith.constant 0 : i32
    return %c0_i32, %c0_i32_0 : i32, i32
  }
  func.func @transform_5(%arg0: i32) -> (i32, i32) {
    %c0_i32 = arith.constant 0 : i32
    %c0_i32_0 = arith.constant 0 : i32
    %c0_i32_1 = arith.constant 0 : i32
    return %c0_i32, %c0_i32_0 : i32, i32
  }
  func.func @transform_6(%arg0: i32) -> (i32, i32) {
    %c0_i32 = arith.constant 0 : i32
    %c0_i32_0 = arith.constant 0 : i32
    return %arg0, %c0_i32 : i32, i32
  }
}

</mosaic_0001>

<llo_original>
// kernel: mixing_layer_concat.1
$region0: #{mixing_layer_concat.1}
  #allocation0 [shape = 'u32[]', space=smem, size = 0x4, offset = 0x4, fixed_abs, tag = 'smem constant byte address 0x4 - core index']
  #allocation1 [shape = 'u32[144,128]{1,0:T(1,128)}', space=vmem, size = 0x12000, scoped, tag = 'internal scratch']
  %s0 = inlined_call_operand.vmem [shape: f32[8,16], index: 0, kind: input, shape index: {}]
  %s1 = inlined_call_operand.vmem [shape: f32[8,32], index: 1, kind: input, shape index: {}]
  %s2 = inlined_call_operand.vmem [shape: f32[8,16], index: 2, kind: input, shape index: {}]
  %s3 = inlined_call_operand.vmem [shape: f32[8,16], index: 3, kind: input, shape index: {}]
  %s4 = inlined_call_operand.vmem [shape: f32[64,32], index: 4, kind: input, shape index: {}]
  %s5 = inlined_call_operand.vmem [shape: f32[1,32], index: 5, kind: input, shape index: {}]
  %s6 = inlined_call_operand.hbm [shape: f32[8,32], index: 6, kind: output, shape index: {}]
  %s7 = sld [smem:[#allocation0]]
  $region34: #{mixing_layer_concat.1} parent=0
    _
  %s9 = ssub.s32 1, %s7
  %s10 = scalar_select 0, %s9, %s7
  $region1: #{mixing_layer_concat.1} parent=0
    #allocation2 [shape = 'u8[4096]{0}', space=vmem, size = 0x1000, scoped, tag = 'output window, operand 0, single buffered']
    #allocation3 [shape = 's32[1]{0}', space=sflag, size = 0x4, scoped, tag = 'scoped memory for mixing_layer_concat.1']
    %11 = vsyncpa [#allocation3], 0
    // Predicated region
    $region2: #{mixing_layer_concat.1} parent=1 // pred_check
      _
    $region3: #{mixing_layer_concat.1} parent=1 // pred_check_branch
      %13 = sbr.rel (0) target = $region5
    $region4: #{mixing_layer_concat.1} parent=1 // pred_region
      _
    $region5: #{mixing_layer_concat.1} parent=1 // pred_fallthru
      _
    // Predicated region
    $region6: #{mixing_layer_concat.1} parent=1 // pred_check
      _
    $region7: #{mixing_layer_concat.1} parent=1 // pred_check_branch
      %15 = sbr.rel (0) target = $region9
    $region8: #{mixing_layer_concat.1} parent=1 // pred_region
      _
    $region9: #{mixing_layer_concat.1} parent=1 // pred_fallthru
      _
    // Predicated region
    $region10: #{mixing_layer_concat.1} parent=1 // pred_check
      _
    $region11: #{mixing_layer_concat.1} parent=1 // pred_check_branch
      %17 = sbr.rel (0) target = $region13
    $region12: #{mixing_layer_concat.1} parent=1 // pred_region
      _
    $region13: #{mixing_layer_concat.1} parent=1 // pred_fallthru
      _
    // Predicated region
    $region14: #{mixing_layer_concat.1} parent=1 // pred_check
      _
    $region15: #{mixing_layer_concat.1} parent=1 // pred_check_branch
      %19 = sbr.rel (0) target = $region17
    $region16: #{mixing_layer_concat.1} parent=1 // pred_region
      _
    $region17: #{mixing_layer_concat.1} parent=1 // pred_fallthru
      _
    // Predicated region
    $region18: #{mixing_layer_concat.1} parent=1 // pred_check
      _
    $region19: #{mixing_layer_concat.1} parent=1 // pred_check_branch
      %21 = sbr.rel (0) target = $region21
    $region20: #{mixing_layer_concat.1} parent=1 // pred_region
      _
    $region21: #{mixing_layer_concat.1} parent=1 // pred_fallthru
      _
    // Predicated region
    $region22: #{mixing_layer_concat.1} parent=1 // pred_check
      _
    $region23: #{mixing_layer_concat.1} parent=1 // pred_check_branch
      %23 = sbr.rel (0) target = $region25
    $region24: #{mixing_layer_concat.1} parent=1 // pred_region
      _
    $region25: #{mixing_layer_concat.1} parent=1 // pred_fallthru
      _
    %v24 = vld [vmem:[%s0] sm:$0xff]
    %v25 = vld [vmem:[%s4] sm:$0xff]
    %v26 = vld [vmem:[%s4 + $0x8] sm:$0xff]
    %v27 = vld [vmem:[%s1] sm:$0xff]
    %v28 = vld [vmem:[%s4 + $0x10] sm:$0xff]
    %v29 = vld [vmem:[%s4 + $0x18] sm:$0xff]
    %v30 = vld [vmem:[%s4 + $0x20] sm:$0xff]
    %v31 = vld [vmem:[%s4 + $0x28] sm:$0xff]
    %vm32 = vcmask 261120
    %v34 = vsel %vm32, %v27, 0
    %36 = vmatprep.subr.mxu0 0.0
    %v37 = vand.u32 %v28, 4294901760
    %38 = vmatpush1.msra.mxu0 %v37
    %39 = vmatprep.subr.mxu0 0.0
    %v40 = vand.u32 %v29, 4294901760
    %41 = vmatpush1.msra.mxu0 %v40
    %42 = vmatprep.subr.mxu0 0.0
    %v43 = vand.u32 %v30, 4294901760
    %44 = vmatpush1.msra.mxu0 %v43
    %45 = vmatprep.subr.mxu0 0.0
    %v46 = vand.u32 %v31, 4294901760
    %47 = vmatpush1.msra.mxu0 %v46
    %48 = vmatprep.subr.mxu0 0.0
    %49 = vmatpush1.msra.mxu0 0.0
    %50 = vmatprep.subr.mxu0 0.0
    %51 = vmatpush1.msra.mxu0 0.0
    %52 = vmatprep.subr.mxu0 0.0
    %53 = vmatpush1.msra.mxu0 0.0
    %54 = vmatprep.subr.mxu0 0.0
    %55 = vmatpush1.msra.mxu0 0.0
    %56 = vmatprep.subr.mxu0 0.0
    %57 = vmatpush1.msra.mxu0 0.0
    %58 = vmatprep.subr.mxu0 0.0
    %59 = vmatpush1.msra.mxu0 0.0
    %60 = vmatprep.subr.mxu0 0.0
    %61 = vmatpush1.msra.mxu0 0.0
    %62 = vmatprep.subr.mxu0 0.0
    %63 = vmatpush1.msra.mxu0 0.0
    %64 = vmatprep.subr.mxu0 0.0
    %65 = vmatpush1.msra.mxu0 0.0
    %66 = vmatprep.subr.mxu0 0.0
    %67 = vmatpush1.msra.mxu0 0.0
    %68 = vmatprep.subr.mxu0 0.0
    %69 = vmatpush1.msra.mxu0 0.0
    %70 = vmatprep.subr.mxu0 0.0
    %71 = vmatpush1.msra.mxu0 0.0
    %72 = vmatprep.subr.mxu0 0.0
    %73 = vmatpush1.msra.mxu0 0.0
    %74 = vmatprep.subr.mxu0 0.0
    %75 = vmatpush1.msra.mxu0 0.0
    %76 = vmatprep.subr.mxu0 0.0
    %77 = vmatpush1.msra.mxu0 0.0
    %78 = vmatprep.subr.mxu0 0.0
    %79 = vmatpush1.msra.mxu0 0.0
    %80 = vmatprep.subr.mxu0 0.0
    %81 = vmatpush1.msra.mxu0 0.0
    %82 = vmatprep.subr.mxu0 0.0
    %83 = vmatpush1.msra.mxu0 0.0
    %84 = vmatprep.subr.mxu0 0.0
    %85 = vmatpush1.msra.mxu0 0.0
    %86 = vmatprep.subr.mxu0 0.0
    %87 = vmatpush1.msra.mxu0 0.0
    %88 = vmatprep.subr.mxu0 0.0
    %89 = vmatpush1.msra.mxu0 0.0
    %90 = vmatprep.subr.mxu0 0.0
    %91 = vmatpush1.msra.mxu0 0.0
    %92 = vmatprep.subr.mxu0 0.0
    %93 = vmatpush1.msra.mxu0 0.0
    %94 = vmatprep.subr.mxu0 0.0
    %95 = vmatpush1.msra.mxu0 0.0
    %96 = vmatprep.subr.mxu0 0.0
    %97 = vmatpush1.msra.mxu0 0.0
    %98 = vmatprep.subr.mxu0 0.0
    %99 = vmatpush1.msra.mxu0 0.0
    %100 = vmatprep.subr.mxu0 0.0
    %101 = vmatpush1.msra.mxu0 0.0
    %102 = vmatprep.subr.mxu0 0.0
    %103 = vmatpush1.msra.mxu0 0.0
    %104 = vmatprep.mubr.f32.mxu0 0.0
    %v105 = vand.u32 %v34, 4294901760
    %v106 = vsub.f32 %v34, %v105
    %v107 = vand.u32 %v106, 4294901760
    %v108 = vsub.f32 %v106, %v107
    %v109 = vand.u32 %v108, 4294901760
    %110 = vmatmul.mubr.f32.gmra.mrb[0].mxu0 %v109
    %v111 = vpop.f32.mrb[0].mxu0
    %v112 = vadd.f32 0.0, %v111
    %v113 = vpop.f32.mrb[0].mxu0
    %114 = vdwg.mxu0
    %115 = vmatprep.subr.mxu0 0.0
    %v116 = vand.u32 %v28, 4294901760
    %v117 = vsub.f32 %v28, %v116
    %v118 = vand.u32 %v117, 4294901760
    %v119 = vsub.f32 %v117, %v118
    %v120 = vand.u32 %v119, 4294901760
    %121 = vmatpush1.msra.mxu0 %v120
    %122 = vmatprep.subr.mxu0 0.0
    %v123 = vand.u32 %v29, 4294901760
    %v124 = vsub.f32 %v29, %v123
    %v125 = vand.u32 %v124, 4294901760
    %v126 = vsub.f32 %v124, %v125
    %v127 = vand.u32 %v126, 4294901760
    %128 = vmatpush1.msra.mxu0 %v127
    %129 = vmatprep.subr.mxu0 0.0
    %v130 = vand.u32 %v30, 4294901760
    %v131 = vsub.f32 %v30, %v130
    %v132 = vand.u32 %v131, 4294901760
    %v133 = vsub.f32 %v131, %v132
    %v134 = vand.u32 %v133, 4294901760
    %135 = vmatpush1.msra.mxu0 %v134
    %136 = vmatprep.subr.mxu0 0.0
    %v137 = vand.u32 %v31, 4294901760
    %v138 = vsub.f32 %v31, %v137
    %v139 = vand.u32 %v138, 4294901760
    %v140 = vsub.f32 %v138, %v139
    %v141 = vand.u32 %v140, 4294901760
    %142 = vmatpush1.msra.mxu0 %v141
    %143 = vmatprep.subr.mxu0 0.0
    %144 = vmatpush1.msra.mxu0 0.0
    %145 = vmatprep.subr.mxu0 0.0
    %146 = vmatpush1.msra.mxu0 0.0
    %147 = vmatprep.subr.mxu0 0.0
    %148 = vmatpush1.msra.mxu0 0.0
    %149 = vmatprep.subr.mxu0 0.0
    %150 = vmatpush1.msra.mxu0 0.0
    %151 = vmatprep.subr.mxu0 0.0
    %152 = vmatpush1.msra.mxu0 0.0
    %153 = vmatprep.subr.mxu0 0.0
    %154 = vmatpush1.msra.mxu0 0.0
    %155 = vmatprep.subr.mxu0 0.0
    %156 = vmatpush1.msra.mxu0 0.0
    %157 = vmatprep.subr.mxu0 0.0
    %158 = vmatpush1.msra.mxu0 0.0
    %159 = vmatprep.subr.mxu0 0.0
    %160 = vmatpush1.msra.mxu0 0.0
    %161 = vmatprep.subr.mxu0 0.0
    %162 = vmatpush1.msra.mxu0 0.0
    %163 = vmatprep.subr.mxu0 0.0
    %164 = vmatpush1.msra.mxu0 0.0
    %165 = vmatprep.subr.mxu0 0.0
    %166 = vmatpush1.msra.mxu0 0.0
    %167 = vmatprep.subr.mxu0 0.0
    %168 = vmatpush1.msra.mxu0 0.0
    %169 = vmatprep.subr.mxu0 0.0
    %170 = vmatpush1.msra.mxu0 0.0
    %171 = vmatprep.subr.mxu0 0.0
    %172 = vmatpush1.msra.mxu0 0.0
    %173 = vmatprep.subr.mxu0 0.0
    %174 = vmatpush1.msra.mxu0 0.0
    %175 = vmatprep.subr.mxu0 0.0
    %176 = vmatpush1.msra.mxu0 0.0
    %177 = vmatprep.subr.mxu0 0.0
    %178 = vmatpush1.msra.mxu0 0.0
    %179 = vmatprep.subr.mxu0 0.0
    %180 = vmatpush1.msra.mxu0 0.0
    %181 = vmatprep.subr.mxu0 0.0
    %182 = vmatpush1.msra.mxu0 0.0
    %183 = vmatprep.subr.mxu0 0.0
    %184 = vmatpush1.msra.mxu0 0.0
    %185 = vmatprep.subr.mxu0 0.0
    %186 = vmatpush1.msra.mxu0 0.0
    %187 = vmatprep.subr.mxu0 0.0
    %188 = vmatpush1.msra.mxu0 0.0
    %189 = vmatprep.subr.mxu0 0.0
    %190 = vmatpush1.msra.mxu0 0.0
    %191 = vmatprep.subr.mxu0 0.0
    %192 = vmatpush1.msra.mxu0 0.0
    %193 = vmatprep.subr.mxu0 0.0
    %194 = vmatpush1.msra.mxu0 0.0
    %195 = vmatprep.subr.mxu0 0.0
    %196 = vmatpush1.msra.mxu0 0.0
    %197 = vmatprep.subr.mxu0 0.0
    %198 = vmatpush1.msra.mxu0 0.0
    %199 = vmatprep.mubr.f32.mxu0 0.0
    %v200 = vand.u32 %v34, 4294901760
    %201 = vmatmul.mubr.f32.gmra.mrb[0].mxu0 %v200
    %v202 = vpop.f32.mrb[0].mxu0
    %v203 = vadd.f32 %v112, %v202
    %v204 = vpop.f32.mrb[0].mxu0
    %205 = vdwg.mxu0
    %206 = vmatprep.subr.mxu0 0.0
    %v207 = vand.u32 %v28, 4294901760
    %v208 = vsub.f32 %v28, %v207
    %209 = vmatpush1.msra.mxu0 %v208
    %210 = vmatprep.subr.mxu0 0.0
    %v211 = vand.u32 %v29, 4294901760
    %v212 = vsub.f32 %v29, %v211
    %213 = vmatpush1.msra.mxu0 %v212
    %214 = vmatprep.subr.mxu0 0.0
    %v215 = vand.u32 %v30, 4294901760
    %v216 = vsub.f32 %v30, %v215
    %217 = vmatpush1.msra.mxu0 %v216
    %218 = vmatprep.subr.mxu0 0.0
    %v219 = vand.u32 %v31, 4294901760
    %v220 = vsub.f32 %v31, %v219
    %221 = vmatpush1.msra.mxu0 %v220
    %222 = vmatprep.subr.mxu0 0.0
    %223 = vmatpush1.msra.mxu0 0.0
    %224 = vmatprep.subr.mxu0 0.0
    %225 = vmatpush1.msra.mxu0 0.0
    %226 = vmatprep.subr.mxu0 0.0
    %227 = vmatpush1.msra.mxu0 0.0
    %228 = vmatprep.subr.mxu0 0.0
    %229 = vmatpush1.msra.mxu0 0.0
    %230 = vmatprep.subr.mxu0 0.0
    %231 = vmatpush1.msra.mxu0 0.0
    %232 = vmatprep.subr.mxu0 0.0
    %233 = vmatpush1.msra.mxu0 0.0
    %234 = vmatprep.subr.mxu0 0.0
    %235 = vmatpush1.msra.mxu0 0.0
    %236 = vmatprep.subr.mxu0 0.0
    %237 = vmatpush1.msra.mxu0 0.0
    %238 = vmatprep.subr.mxu0 0.0
    %239 = vmatpush1.msra.mxu0 0.0
    %240 = vmatprep.subr.mxu0 0.0
    %241 = vmatpush1.msra.mxu0 0.0
    %242 = vmatprep.subr.mxu0 0.0
    %243 = vmatpush1.msra.mxu0 0.0
    %244 = vmatprep.subr.mxu0 0.0
    %245 = vmatpush1.msra.mxu0 0.0
    %246 = vmatprep.subr.mxu0 0.0
    %247 = vmatpush1.msra.mxu0 0.0
    %248 = vmatprep.subr.mxu0 0.0
    %249 = vmatpush1.msra.mxu0 0.0
    %250 = vmatprep.subr.mxu0 0.0
    %251 = vmatpush1.msra.mxu0 0.0
    %252 = vmatprep.subr.mxu0 0.0
    %253 = vmatpush1.msra.mxu0 0.0
    %254 = vmatprep.subr.mxu0 0.0
    %255 = vmatpush1.msra.mxu0 0.0
    %256 = vmatprep.subr.mxu0 0.0
    %257 = vmatpush1.msra.mxu0 0.0
    %258 = vmatprep.subr.mxu0 0.0
    %259 = vmatpush1.msra.mxu0 0.0
    %260 = vmatprep.subr.mxu0 0.0
    %261 = vmatpush1.msra.mxu0 0.0
    %262 = vmatprep.subr.mxu0 0.0
    %263 = vmatpush1.msra.mxu0 0.0
    %264 = vmatprep.subr.mxu0 0.0
    %265 = vmatpush1.msra.mxu0 0.0
    %266 = vmatprep.subr.mxu0 0.0
    %267 = vmatpush1.msra.mxu0 0.0
    %268 = vmatprep.subr.mxu0 0.0
    %269 = vmatpush1.msra.mxu0 0.0
    %270 = vmatprep.subr.mxu0 0.0
    %271 = vmatpush1.msra.mxu0 0.0
    %272 = vmatprep.subr.mxu0 0.0
    %273 = vmatpush1.msra.mxu0 0.0
    %274 = vmatprep.subr.mxu0 0.0
    %275 = vmatpush1.msra.mxu0 0.0
    %276 = vmatprep.subr.mxu0 0.0
    %277 = vmatpush1.msra.mxu0 0.0
    %278 = vmatprep.mubr.f32.mxu0 0.0
    %v279 = vand.u32 %v34, 4294901760
    %v280 = vsub.f32 %v34, %v279
    %281 = vmatmul.mubr.f32.gmra.mrb[0].mxu0 %v280
    %v282 = vpop.f32.mrb[0].mxu0
    %v283 = vadd.f32 %v203, %v282
    %v284 = vpop.f32.mrb[0].mxu0
    %285 = vdwg.mxu0
    %286 = vmatprep.subr.mxu0 0.0
    %v287 = vand.u32 %v28, 4294901760
    %288 = vmatpush1.msra.mxu0 %v287
    %289 = vmatprep.subr.mxu0 0.0
    %v290 = vand.u32 %v29, 4294901760
    %291 = vmatpush1.msra.mxu0 %v290
    %292 = vmatprep.subr.mxu0 0.0
    %v293 = vand.u32 %v30, 4294901760
    %294 = vmatpush1.msra.mxu0 %v293
    %295 = vmatprep.subr.mxu0 0.0
    %v296 = vand.u32 %v31, 4294901760
    %297 = vmatpush1.msra.mxu0 %v296
    %298 = vmatprep.subr.mxu0 0.0
    %299 = vmatpush1.msra.mxu0 0.0
    %300 = vmatprep.subr.mxu0 0.0
    %301 = vmatpush1.msra.mxu0 0.0
    %302 = vmatprep.subr.mxu0 0.0
    %303 = vmatpush1.msra.mxu0 0.0
    %304 = vmatprep.subr.mxu0 0.0
    %305 = vmatpush1.msra.mxu0 0.0
    %306 = vmatprep.subr.mxu0 0.0
    %307 = vmatpush1.msra.mxu0 0.0
    %308 = vmatprep.subr.mxu0 0.0
    %309 = vmatpush1.msra.mxu0 0.0
    %310 = vmatprep.subr.mxu0 0.0
    %311 = vmatpush1.msra.mxu0 0.0
    %312 = vmatprep.subr.mxu0 0.0
    %313 = vmatpush1.msra.mxu0 0.0
    %314 = vmatprep.subr.mxu0 0.0
    %315 = vmatpush1.msra.mxu0 0.0
    %316 = vmatprep.subr.mxu0 0.0
    %317 = vmatpush1.msra.mxu0 0.0
    %318 = vmatprep.subr.mxu0 0.0
    %319 = vmatpush1.msra.mxu0 0.0
    %320 = vmatprep.subr.mxu0 0.0
    %321 = vmatpush1.msra.mxu0 0.0
    %322 = vmatprep.subr.mxu0 0.0
    %323 = vmatpush1.msra.mxu0 0.0
    %324 = vmatprep.subr.mxu0 0.0
    %325 = vmatpush1.msra.mxu0 0.0
    %326 = vmatprep.subr.mxu0 0.0
    %327 = vmatpush1.msra.mxu0 0.0
    %328 = vmatprep.subr.mxu0 0.0
    %329 = vmatpush1.msra.mxu0 0.0
    %330 = vmatprep.subr.mxu0 0.0
    %331 = vmatpush1.msra.mxu0 0.0
    %332 = vmatprep.subr.mxu0 0.0
    %333 = vmatpush1.msra.mxu0 0.0
    %334 = vmatprep.subr.mxu0 0.0
    %335 = vmatpush1.msra.mxu0 0.0
    %336 = vmatprep.subr.mxu0 0.0
    %337 = vmatpush1.msra.mxu0 0.0
    %338 = vmatprep.subr.mxu0 0.0
    %339 = vmatpush1.msra.mxu0 0.0
    %340 = vmatprep.subr.mxu0 0.0
    %341 = vmatpush1.msra.mxu0 0.0
    %342 = vmatprep.subr.mxu0 0.0
    %343 = vmatpush1.msra.mxu0 0.0
    %344 = vmatprep.subr.mxu0 0.0
    %345 = vmatpush1.msra.mxu0 0.0
    %346 = vmatprep.subr.mxu0 0.0
    %347 = vmatpush1.msra.mxu0 0.0
    %348 = vmatprep.subr.mxu0 0.0
    %349 = vmatpush1.msra.mxu0 0.0
    %350 = vmatprep.subr.mxu0 0.0
    %351 = vmatpush1.msra.mxu0 0.0
    %352 = vmatprep.subr.mxu0 0.0
    %353 = vmatpush1.msra.mxu0 0.0
    %354 = vmatprep.mubr.f32.mxu0 0.0
    %v355 = vand.u32 %v34, 4294901760
    %v356 = vsub.f32 %v34, %v355
    %v357 = vand.u32 %v356, 4294901760
    %358 = vmatmul.mubr.f32.gmra.mrb[0].mxu0 %v357
    %v359 = vpop.f32.mrb[0].mxu0
    %v360 = vadd.f32 %v283, %v359
    %v361 = vpop.f32.mrb[0].mxu0
    %362 = vdwg.mxu0
    %363 = vmatprep.subr.mxu0 0.0
    %v364 = vand.u32 %v28, 4294901760
    %v365 = vsub.f32 %v28, %v364
    %v366 = vand.u32 %v365, 4294901760
    %367 = vmatpush1.msra.mxu0 %v366
    %368 = vmatprep.subr.mxu0 0.0
    %v369 = vand.u32 %v29, 4294901760
    %v370 = vsub.f32 %v29, %v369
    %v371 = vand.u32 %v370, 4294901760
    %372 = vmatpush1.msra.mxu0 %v371
    %373 = vmatprep.subr.mxu0 0.0
    %v374 = vand.u32 %v30, 4294901760
    %v375 = vsub.f32 %v30, %v374
    %v376 = vand.u32 %v375, 4294901760
    %377 = vmatpush1.msra.mxu0 %v376
    %378 = vmatprep.subr.mxu0 0.0
    %v379 = vand.u32 %v31, 4294901760
    %v380 = vsub.f32 %v31, %v379
    %v381 = vand.u32 %v380, 4294901760
    %382 = vmatpush1.msra.mxu0 %v381
    %383 = vmatprep.subr.mxu0 0.0
    %384 = vmatpush1.msra.mxu0 0.0
    %385 = vmatprep.subr.mxu0 0.0
    %386 = vmatpush1.msra.mxu0 0.0
    %387 = vmatprep.subr.mxu0 0.0
    %388 = vmatpush1.msra.mxu0 0.0
    %389 = vmatprep.subr.mxu0 0.0
    %390 = vmatpush1.msra.mxu0 0.0
    %391 = vmatprep.subr.mxu0 0.0
    %392 = vmatpush1.msra.mxu0 0.0
    %393 = vmatprep.subr.mxu0 0.0
    %394 = vmatpush1.msra.mxu0 0.0
    %395 = vmatprep.subr.mxu0 0.0
    %396 = vmatpush1.msra.mxu0 0.0
    %397 = vmatprep.subr.mxu0 0.0
    %398 = vmatpush1.msra.mxu0 0.0
    %399 = vmatprep.subr.mxu0 0.0
    %400 = vmatpush1.msra.mxu0 0.0
    %401 = vmatprep.subr.mxu0 0.0
    %402 = vmatpush1.msra.mxu0 0.0
    %403 = vmatprep.subr.mxu0 0.0
    %404 = vmatpush1.msra.mxu0 0.0
    %405 = vmatprep.subr.mxu0 0.0
    %406 = vmatpush1.msra.mxu0 0.0
    %407 = vmatprep.subr.mxu0 0.0
    %408 = vmatpush1.msra.mxu0 0.0
    %409 = vmatprep.subr.mxu0 0.0
    %410 = vmatpush1.msra.mxu0 0.0
    %411 = vmatprep.subr.mxu0 0.0
    %412 = vmatpush1.msra.mxu0 0.0
    %413 = vmatprep.subr.mxu0 0.0
    %414 = vmatpush1.msra.mxu0 0.0
    %415 = vmatprep.subr.mxu0 0.0
    %416 = vmatpush1.msra.mxu0 0.0
    %417 = vmatprep.subr.mxu0 0.0
    %418 = vmatpush1.msra.mxu0 0.0
    %419 = vmatprep.subr.mxu0 0.0
    %420 = vmatpush1.msra.mxu0 0.0
    %421 = vmatprep.subr.mxu0 0.0
    %422 = vmatpush1.msra.mxu0 0.0
    %423 = vmatprep.subr.mxu0 0.0
    %424 = vmatpush1.msra.mxu0 0.0
    %425 = vmatprep.subr.mxu0 0.0
    %426 = vmatpush1.msra.mxu0 0.0
    %427 = vmatprep.subr.mxu0 0.0
    %428 = vmatpush1.msra.mxu0 0.0
    %429 = vmatprep.subr.mxu0 0.0
    %430 = vmatpush1.msra.mxu0 0.0
    %431 = vmatprep.subr.mxu0 0.0
    %432 = vmatpush1.msra.mxu0 0.0
    %433 = vmatprep.subr.mxu0 0.0
    %434 = vmatpush1.msra.mxu0 0.0
    %435 = vmatprep.subr.mxu0 0.0
    %436 = vmatpush1.msra.mxu0 0.0
    %437 = vmatprep.subr.mxu0 0.0
    %438 = vmatpush1.msra.mxu0 0.0
    %439 = vmatprep.mubr.f32.mxu0 0.0
    %v440 = vand.u32 %v34, 4294901760
    %441 = vmatmul.mubr.f32.gmra.mrb[0].mxu0 %v440
    %v442 = vpop.f32.mrb[0].mxu0
    %v443 = vadd.f32 %v360, %v442
    %v444 = vpop.f32.mrb[0].mxu0
    %445 = vdwg.mxu0
    %446 = vmatprep.subr.mxu0 0.0
    %v447 = vand.u32 %v28, 4294901760
    %448 = vmatpush1.msra.mxu0 %v447
    %449 = vmatprep.subr.mxu0 0.0
    %v450 = vand.u32 %v29, 4294901760
    %451 = vmatpush1.msra.mxu0 %v450
    %452 = vmatprep.subr.mxu0 0.0
    %v453 = vand.u32 %v30, 4294901760
    %454 = vmatpush1.msra.mxu0 %v453
    %455 = vmatprep.subr.mxu0 0.0
    %v456 = vand.u32 %v31, 4294901760
    %457 = vmatpush1.msra.mxu0 %v456
    %458 = vmatprep.subr.mxu0 0.0
    %459 = vmatpush1.msra.mxu0 0.0
    %460 = vmatprep.subr.mxu0 0.0
    %461 = vmatpush1.msra.mxu0 0.0
    %462 = vmatprep.subr.mxu0 0.0
    %463 = vmatpush1.msra.mxu0 0.0
    %464 = vmatprep.subr.mxu0 0.0
    %465 = vmatpush1.msra.mxu0 0.0
    %466 = vmatprep.subr.mxu0 0.0
    %467 = vmatpush1.msra.mxu0 0.0
    %468 = vmatprep.subr.mxu0 0.0
    %469 = vmatpush1.msra.mxu0 0.0
    %470 = vmatprep.subr.mxu0 0.0
    %471 = vmatpush1.msra.mxu0 0.0
    %472 = vmatprep.subr.mxu0 0.0
    %473 = vmatpush1.msra.mxu0 0.0
    %474 = vmatprep.subr.mxu0 0.0
    %475 = vmatpush1.msra.mxu0 0.0
    %476 = vmatprep.subr.mxu0 0.0
    %477 = vmatpush1.msra.mxu0 0.0
    %478 = vmatprep.subr.mxu0 0.0
    %479 = vmatpush1.msra.mxu0 0.0
    %480 = vmatprep.subr.mxu0 0.0
    %481 = vmatpush1.msra.mxu0 0.0
    %482 = vmatprep.subr.mxu0 0.0
    %483 = vmatpush1.msra.mxu0 0.0
    %484 = vmatprep.subr.mxu0 0.0
    %485 = vmatpush1.msra.mxu0 0.0
    %486 = vmatprep.subr.mxu0 0.0
    %487 = vmatpush1.msra.mxu0 0.0
    %488 = vmatprep.subr.mxu0 0.0
    %489 = vmatpush1.msra.mxu0 0.0
    %490 = vmatprep.subr.mxu0 0.0
    %491 = vmatpush1.msra.mxu0 0.0
    %492 = vmatprep.subr.mxu0 0.0
    %493 = vmatpush1.msra.mxu0 0.0
    %494 = vmatprep.subr.mxu0 0.0
    %495 = vmatpush1.msra.mxu0 0.0
    %496 = vmatprep.subr.mxu0 0.0
    %497 = vmatpush1.msra.mxu0 0.0
    %498 = vmatprep.subr.mxu0 0.0
    %499 = vmatpush1.msra.mxu0 0.0
    %500 = vmatprep.subr.mxu0 0.0
    %501 = vmatpush1.msra.mxu0 0.0
    %502 = vmatprep.subr.mxu0 0.0
    %503 = vmatpush1.msra.mxu0 0.0
    %504 = vmatprep.subr.mxu0 0.0
    %505 = vmatpush1.msra.mxu0 0.0
    %506 = vmatprep.subr.mxu0 0.0
    %507 = vmatpush1.msra.mxu0 0.0
    %508 = vmatprep.subr.mxu0 0.0
    %509 = vmatpush1.msra.mxu0 0.0
    %510 = vmatprep.subr.mxu0 0.0
    %511 = vmatpush1.msra.mxu0 0.0
    %512 = vmatprep.subr.mxu0 0.0
    %513 = vmatpush1.msra.mxu0 0.0
    %514 = vmatprep.mubr.f32.mxu0 0.0
    %v515 = vand.u32 %v34, 4294901760
    %516 = vmatmul.mubr.f32.gmra.mrb[0].mxu0 %v515
    %v517 = vpop.f32.mrb[0].mxu0
    %v518 = vadd.f32 %v443, %v517
    %v519 = vpop.f32.mrb[0].mxu0
    %520 = vdwg.mxu0
    %vm521 = vcmask 130048
    %v523 = vsel %vm521, %v24, 0
    %525 = vmatprep.subr.mxu0 0.0
    %v526 = vand.u32 %v25, 4294901760
    %527 = vmatpush1.msra.mxu0 %v526
    %528 = vmatprep.subr.mxu0 0.0
    %v529 = vand.u32 %v26, 4294901760
    %530 = vmatpush1.msra.mxu0 %v529
    %531 = vmatprep.subr.mxu0 0.0
    %532 = vmatpush1.msra.mxu0 0.0
    %533 = vmatprep.subr.mxu0 0.0
    %534 = vmatpush1.msra.mxu0 0.0
    %535 = vmatprep.subr.mxu0 0.0
    %536 = vmatpush1.msra.mxu0 0.0
    %537 = vmatprep.subr.mxu0 0.0
    %538 = vmatpush1.msra.mxu0 0.0
    %539 = vmatprep.subr.mxu0 0.0
    %540 = vmatpush1.msra.mxu0 0.0
    %541 = vmatprep.subr.mxu0 0.0
    %542 = vmatpush1.msra.mxu0 0.0
    %543 = vmatprep.subr.mxu0 0.0
    %544 = vmatpush1.msra.mxu0 0.0
    %545 = vmatprep.subr.mxu0 0.0
    %546 = vmatpush1.msra.mxu0 0.0
    %547 = vmatprep.subr.mxu0 0.0
    %548 = vmatpush1.msra.mxu0 0.0
    %549 = vmatprep.subr.mxu0 0.0
    %550 = vmatpush1.msra.mxu0 0.0
    %551 = vmatprep.subr.mxu0 0.0
    %552 = vmatpush1.msra.mxu0 0.0
    %553 = vmatprep.subr.mxu0 0.0
    %554 = vmatpush1.msra.mxu0 0.0
    %555 = vmatprep.subr.mxu0 0.0
    %556 = vmatpush1.msra.mxu0 0.0
    %557 = vmatprep.subr.mxu0 0.0
    %558 = vmatpush1.msra.mxu0 0.0
    %559 = vmatprep.subr.mxu0 0.0
    %560 = vmatpush1.msra.mxu0 0.0
    %561 = vmatprep.subr.mxu0 0.0
    %562 = vmatpush1.msra.mxu0 0.0
    %563 = vmatprep.subr.mxu0 0.0
    %564 = vmatpush1.msra.mxu0 0.0
    %565 = vmatprep.subr.mxu0 0.0
    %566 = vmatpush1.msra.mxu0 0.0
    %567 = vmatprep.subr.mxu0 0.0
    %568 = vmatpush1.msra.mxu0 0.0
    %569 = vmatprep.subr.mxu0 0.0
    %570 = vmatpush1.msra.mxu0 0.0
    %571 = vmatprep.subr.mxu0 0.0
    %572 = vmatpush1.msra.mxu0 0.0
    %573 = vmatprep.subr.mxu0 0.0
    %574 = vmatpush1.msra.mxu0 0.0
    %575 = vmatprep.subr.mxu0 0.0
    %576 = vmatpush1.msra.mxu0 0.0
    %577 = vmatprep.subr.mxu0 0.0
    %578 = vmatpush1.msra.mxu0 0.0
    %579 = vmatprep.subr.mxu0 0.0
    %580 = vmatpush1.msra.mxu0 0.0
    %581 = vmatprep.subr.mxu0 0.0
    %582 = vmatpush1.msra.mxu0 0.0
    %583 = vmatprep.subr.mxu0 0.0
    %584 = vmatpush1.msra.mxu0 0.0
    %585 = vmatprep.subr.mxu0 0.0
    %586 = vmatpush1.msra.mxu0 0.0
    %587 = vmatprep.subr.mxu0 0.0
    %588 = vmatpush1.msra.mxu0 0.0
    %589 = vmatprep.subr.mxu0 0.0
    %590 = vmatpush1.msra.mxu0 0.0
    %591 = vmatprep.mubr.f32.mxu0 0.0
    %v592 = vand.u32 %v523, 4294901760
    %v593 = vsub.f32 %v523, %v592
    %v594 = vand.u32 %v593, 4294901760
    %v595 = vsub.f32 %v593, %v594
    %v596 = vand.u32 %v595, 4294901760
    %597 = vmatmul.mubr.f32.gmra.mrb[0].mxu0 %v596
    %v598 = vpop.f32.mrb[0].mxu0
    %v599 = vadd.f32 %v518, %v598
    %v600 = vpop.f32.mrb[0].mxu0
    %601 = vdwg.mxu0
    %602 = vmatprep.subr.mxu0 0.0
    %v603 = vand.u32 %v25, 4294901760
    %v604 = vsub.f32 %v25, %v603
    %v605 = vand.u32 %v604, 4294901760
    %v606 = vsub.f32 %v604, %v605
    %v607 = vand.u32 %v606, 4294901760
    %608 = vmatpush1.msra.mxu0 %v607
    %609 = vmatprep.subr.mxu0 0.0
    %v610 = vand.u32 %v26, 4294901760
    %v611 = vsub.f32 %v26, %v610
    %v612 = vand.u32 %v611, 4294901760
    %v613 = vsub.f32 %v611, %v612
    %v614 = vand.u32 %v613, 4294901760
    %615 = vmatpush1.msra.mxu0 %v614
    %616 = vmatprep.subr.mxu0 0.0
    %617 = vmatpush1.msra.mxu0 0.0
    %618 = vmatprep.subr.mxu0 0.0
    %619 = vmatpush1.msra.mxu0 0.0
    %620 = vmatprep.subr.mxu0 0.0
    %621 = vmatpush1.msra.mxu0 0.0
    %622 = vmatprep.subr.mxu0 0.0
    %623 = vmatpush1.msra.mxu0 0.0
    %624 = vmatprep.subr.mxu0 0.0
    %625 = vmatpush1.msra.mxu0 0.0
    %626 = vmatprep.subr.mxu0 0.0
    %627 = vmatpush1.msra.mxu0 0.0
    %628 = vmatprep.subr.mxu0 0.0
    %629 = vmatpush1.msra.mxu0 0.0
    %630 = vmatprep.subr.mxu0 0.0
    %631 = vmatpush1.msra.mxu0 0.0
    %632 = vmatprep.subr.mxu0 0.0
    %633 = vmatpush1.msra.mxu0 0.0
    %634 = vmatprep.subr.mxu0 0.0
    %635 = vmatpush1.msra.mxu0 0.0
    %636 = vmatprep.subr.mxu0 0.0
    %637 = vmatpush1.msra.mxu0 0.0
    %638 = vmatprep.subr.mxu0 0.0
    %639 = vmatpush1.msra.mxu0 0.0
    %640 = vmatprep.subr.mxu0 0.0
    %641 = vmatpush1.msra.mxu0 0.0
    %642 = vmatprep.subr.mxu0 0.0
    %643 = vmatpush1.msra.mxu0 0.0
    %644 = vmatprep.subr.mxu0 0.0
    %645 = vmatpush1.msra.mxu0 0.0
    %646 = vmatprep.subr.mxu0 0.0
    %647 = vmatpush1.msra.mxu0 0.0
    %648 = vmatprep.subr.mxu0 0.0
    %649 = vmatpush1.msra.mxu0 0.0
    %650 = vmatprep.subr.mxu0 0.0
    %651 = vmatpush1.msra.mxu0 0.0
    %652 = vmatprep.subr.mxu0 0.0
    %653 = vmatpush1.msra.mxu0 0.0
    %654 = vmatprep.subr.mxu0 0.0
    %655 = vmatpush1.msra.mxu0 0.0
    %656 = vmatprep.subr.mxu0 0.0
    %657 = vmatpush1.msra.mxu0 0.0
    %658 = vmatprep.subr.mxu0 0.0
    %659 = vmatpush1.msra.mxu0 0.0
    %660 = vmatprep.subr.mxu0 0.0
    %661 = vmatpush1.msra.mxu0 0.0
    %662 = vmatprep.subr.mxu0 0.0
    %663 = vmatpush1.msra.mxu0 0.0
    %664 = vmatprep.subr.mxu0 0.0
    %665 = vmatpush1.msra.mxu0 0.0
    %666 = vmatprep.subr.mxu0 0.0
    %667 = vmatpush1.msra.mxu0 0.0
    %668 = vmatprep.subr.mxu0 0.0
    %669 = vmatpush1.msra.mxu0 0.0
    %670 = vmatprep.subr.mxu0 0.0
    %671 = vmatpush1.msra.mxu0 0.0
    %672 = vmatprep.subr.mxu0 0.0
    %673 = vmatpush1.msra.mxu0 0.0
    %674 = vmatprep.subr.mxu0 0.0
    %675 = vmatpush1.msra.mxu0 0.0
    %676 = vmatprep.mubr.f32.mxu0 0.0
    %v677 = vand.u32 %v523, 4294901760
    %678 = vmatmul.mubr.f32.gmra.mrb[0].mxu0 %v677
    %v679 = vpop.f32.mrb[0].mxu0
    %v680 = vadd.f32 %v599, %v679
    %v681 = vpop.f32.mrb[0].mxu0
    %682 = vdwg.mxu0
    %683 = vmatprep.subr.mxu0 0.0
    %v684 = vand.u32 %v25, 4294901760
    %v685 = vsub.f32 %v25, %v684
    %686 = vmatpush1.msra.mxu0 %v685
    %687 = vmatprep.subr.mxu0 0.0
    %v688 = vand.u32 %v26, 4294901760
    %v689 = vsub.f32 %v26, %v688
    %690 = vmatpush1.msra.mxu0 %v689
    %691 = vmatprep.subr.mxu0 0.0
    %692 = vmatpush1.msra.mxu0 0.0
    %693 = vmatprep.subr.mxu0 0.0
    %694 = vmatpush1.msra.mxu0 0.0
    %695 = vmatprep.subr.mxu0 0.0
    %696 = vmatpush1.msra.mxu0 0.0
    %697 = vmatprep.subr.mxu0 0.0
    %698 = vmatpush1.msra.mxu0 0.0
    %699 = vmatprep.subr.mxu0 0.0
    %700 = vmatpush1.msra.mxu0 0.0
    %701 = vmatprep.subr.mxu0 0.0
    %702 = vmatpush1.msra.mxu0 0.0
    %703 = vmatprep.subr.mxu0 0.0
    %704 = vmatpush1.msra.mxu0 0.0
    %705 = vmatprep.subr.mxu0 0.0
    %706 = vmatpush1.msra.mxu0 0.0
    %707 = vmatprep.subr.mxu0 0.0
    %708 = vmatpush1.msra.mxu0 0.0
    %709 = vmatprep.subr.mxu0 0.0
    %710 = vmatpush1.msra.mxu0 0.0
    %711 = vmatprep.subr.mxu0 0.0
    %712 = vmatpush1.msra.mxu0 0.0
    %713 = vmatprep.subr.mxu0 0.0
    %714 = vmatpush1.msra.mxu0 0.0
    %715 = vmatprep.subr.mxu0 0.0
    %716 = vmatpush1.msra.mxu0 0.0
    %717 = vmatprep.subr.mxu0 0.0
    %718 = vmatpush1.msra.mxu0 0.0
    %719 = vmatprep.subr.mxu0 0.0
    %720 = vmatpush1.msra.mxu0 0.0
    %721 = vmatprep.subr.mxu0 0.0
    %722 = vmatpush1.msra.mxu0 0.0
    %723 = vmatprep.subr.mxu0 0.0
    %724 = vmatpush1.msra.mxu0 0.0
    %725 = vmatprep.subr.mxu0 0.0
    %726 = vmatpush1.msra.mxu0 0.0
    %727 = vmatprep.subr.mxu0 0.0
    %728 = vmatpush1.msra.mxu0 0.0
    %729 = vmatprep.subr.mxu0 0.0
    %730 = vmatpush1.msra.mxu0 0.0
    %731 = vmatprep.subr.mxu0 0.0
    %732 = vmatpush1.msra.mxu0 0.0
    %733 = vmatprep.subr.mxu0 0.0
    %734 = vmatpush1.msra.mxu0 0.0
    %735 = vmatprep.subr.mxu0 0.0
    %736 = vmatpush1.msra.mxu0 0.0
    %737 = vmatprep.subr.mxu0 0.0
    %738 = vmatpush1.msra.mxu0 0.0
    %739 = vmatprep.subr.mxu0 0.0
    %740 = vmatpush1.msra.mxu0 0.0
    %741 = vmatprep.subr.mxu0 0.0
    %742 = vmatpush1.msra.mxu0 0.0
    %743 = vmatprep.subr.mxu0 0.0
    %744 = vmatpush1.msra.mxu0 0.0
    %745 = vmatprep.subr.mxu0 0.0
    %746 = vmatpush1.msra.mxu0 0.0
    %747 = vmatprep.subr.mxu0 0.0
    %748 = vmatpush1.msra.mxu0 0.0
    %749 = vmatprep.subr.mxu0 0.0
    %750 = vmatpush1.msra.mxu0 0.0
    %751 = vmatprep.mubr.f32.mxu0 0.0
    %v752 = vand.u32 %v523, 4294901760
    %v753 = vsub.f32 %v523, %v752
    %754 = vmatmul.mubr.f32.gmra.mrb[0].mxu0 %v753
    %v755 = vpop.f32.mrb[0].mxu0
    %v756 = vadd.f32 %v680, %v755
    %v757 = vpop.f32.mrb[0].mxu0
    %758 = vdwg.mxu0
    %759 = vmatprep.subr.mxu0 0.0
    %v760 = vand.u32 %v25, 4294901760
    %761 = vmatpush1.msra.mxu0 %v760
    %762 = vmatprep.subr.mxu0 0.0
    %v763 = vand.u32 %v26, 4294901760
    %764 = vmatpush1.msra.mxu0 %v763
    %765 = vmatprep.subr.mxu0 0.0
    %766 = vmatpush1.msra.mxu0 0.0
    %767 = vmatprep.subr.mxu0 0.0
    %768 = vmatpush1.msra.mxu0 0.0
    %769 = vmatprep.subr.mxu0 0.0
    %770 = vmatpush1.msra.mxu0 0.0
    %771 = vmatprep.subr.mxu0 0.0
    %772 = vmatpush1.msra.mxu0 0.0
    %773 = vmatprep.subr.mxu0 0.0
    %774 = vmatpush1.msra.mxu0 0.0
    %775 = vmatprep.subr.mxu0 0.0
    %776 = vmatpush1.msra.mxu0 0.0
    %777 = vmatprep.subr.mxu0 0.0
    %778 = vmatpush1.msra.mxu0 0.0
    %779 = vmatprep.subr.mxu0 0.0
    %780 = vmatpush1.msra.mxu0 0.0
    %781 = vmatprep.subr.mxu0 0.0
    %782 = vmatpush1.msra.mxu0 0.0
    %783 = vmatprep.subr.mxu0 0.0
    %784 = vmatpush1.msra.mxu0 0.0
    %785 = vmatprep.subr.mxu0 0.0
    %786 = vmatpush1.msra.mxu0 0.0
    %787 = vmatprep.subr.mxu0 0.0
    %788 = vmatpush1.msra.mxu0 0.0
    %789 = vmatprep.subr.mxu0 0.0
    %790 = vmatpush1.msra.mxu0 0.0
    %791 = vmatprep.subr.mxu0 0.0
    %792 = vmatpush1.msra.mxu0 0.0
    %793 = vmatprep.subr.mxu0 0.0
    %794 = vmatpush1.msra.mxu0 0.0
    %795 = vmatprep.subr.mxu0 0.0
    %796 = vmatpush1.msra.mxu0 0.0
    %797 = vmatprep.subr.mxu0 0.0
    %798 = vmatpush1.msra.mxu0 0.0
    %799 = vmatprep.subr.mxu0 0.0
    %800 = vmatpush1.msra.mxu0 0.0
    %801 = vmatprep.subr.mxu0 0.0
    %802 = vmatpush1.msra.mxu0 0.0
    %803 = vmatprep.subr.mxu0 0.0
    %804 = vmatpush1.msra.mxu0 0.0
    %805 = vmatprep.subr.mxu0 0.0
    %806 = vmatpush1.msra.mxu0 0.0
    %807 = vmatprep.subr.mxu0 0.0
    %808 = vmatpush1.msra.mxu0 0.0
    %809 = vmatprep.subr.mxu0 0.0
    %810 = vmatpush1.msra.mxu0 0.0
    %811 = vmatprep.subr.mxu0 0.0
    %812 = vmatpush1.msra.mxu0 0.0
    %813 = vmatprep.subr.mxu0 0.0
    %814 = vmatpush1.msra.mxu0 0.0
    %815 = vmatprep.subr.mxu0 0.0
    %816 = vmatpush1.msra.mxu0 0.0
    %817 = vmatprep.subr.mxu0 0.0
    %818 = vmatpush1.msra.mxu0 0.0
    %819 = vmatprep.subr.mxu0 0.0
    %820 = vmatpush1.msra.mxu0 0.0
    %821 = vmatprep.subr.mxu0 0.0
    %822 = vmatpush1.msra.mxu0 0.0
    %823 = vmatprep.subr.mxu0 0.0
    %824 = vmatpush1.msra.mxu0 0.0
    %825 = vmatprep.mubr.f32.mxu0 0.0
    %v826 = vand.u32 %v523, 4294901760
    %v827 = vsub.f32 %v523, %v826
    %v828 = vand.u32 %v827, 4294901760
    %829 = vmatmul.mubr.f32.gmra.mrb[0].mxu0 %v828
    %v830 = vpop.f32.mrb[0].mxu0
    %v831 = vadd.f32 %v756, %v830
    %v832 = vpop.f32.mrb[0].mxu0
    %833 = vdwg.mxu0
    %834 = vmatprep.subr.mxu0 0.0
    %v835 = vand.u32 %v25, 4294901760
    %v836 = vsub.f32 %v25, %v835
    %v837 = vand.u32 %v836, 4294901760
    %838 = vmatpush1.msra.mxu0 %v837
    %839 = vmatprep.subr.mxu0 0.0
    %v840 = vand.u32 %v26, 4294901760
    %v841 = vsub.f32 %v26, %v840
    %v842 = vand.u32 %v841, 4294901760
    %843 = vmatpush1.msra.mxu0 %v842
    %844 = vmatprep.subr.mxu0 0.0
    %845 = vmatpush1.msra.mxu0 0.0
    %846 = vmatprep.subr.mxu0 0.0
    %847 = vmatpush1.msra.mxu0 0.0
    %848 = vmatprep.subr.mxu0 0.0
    %849 = vmatpush1.msra.mxu0 0.0
    %850 = vmatprep.subr.mxu0 0.0
    %851 = vmatpush1.msra.mxu0 0.0
    %852 = vmatprep.subr.mxu0 0.0
    %853 = vmatpush1.msra.mxu0 0.0
    %854 = vmatprep.subr.mxu0 0.0
    %855 = vmatpush1.msra.mxu0 0.0
    %856 = vmatprep.subr.mxu0 0.0
    %857 = vmatpush1.msra.mxu0 0.0
    %858 = vmatprep.subr.mxu0 0.0
    %859 = vmatpush1.msra.mxu0 0.0
    %860 = vmatprep.subr.mxu0 0.0
    %861 = vmatpush1.msra.mxu0 0.0
    %862 = vmatprep.subr.mxu0 0.0
    %863 = vmatpush1.msra.mxu0 0.0
    %864 = vmatprep.subr.mxu0 0.0
    %865 = vmatpush1.msra.mxu0 0.0
    %866 = vmatprep.subr.mxu0 0.0
    %867 = vmatpush1.msra.mxu0 0.0
    %868 = vmatprep.subr.mxu0 0.0
    %869 = vmatpush1.msra.mxu0 0.0
    %870 = vmatprep.subr.mxu0 0.0
    %871 = vmatpush1.msra.mxu0 0.0
    %872 = vmatprep.subr.mxu0 0.0
    %873 = vmatpush1.msra.mxu0 0.0
    %874 = vmatprep.subr.mxu0 0.0
    %875 = vmatpush1.msra.mxu0 0.0
    %876 = vmatprep.subr.mxu0 0.0
    %877 = vmatpush1.msra.mxu0 0.0
    %878 = vmatprep.subr.mxu0 0.0
    %879 = vmatpush1.msra.mxu0 0.0
    %880 = vmatprep.subr.mxu0 0.0
    %881 = vmatpush1.msra.mxu0 0.0
    %882 = vmatprep.subr.mxu0 0.0
    %883 = vmatpush1.msra.mxu0 0.0
    %884 = vmatprep.subr.mxu0 0.0
    %885 = vmatpush1.msra.mxu0 0.0
    %886 = vmatprep.subr.mxu0 0.0
    %887 = vmatpush1.msra.mxu0 0.0
    %888 = vmatprep.subr.mxu0 0.0
    %889 = vmatpush1.msra.mxu0 0.0
    %890 = vmatprep.subr.mxu0 0.0
    %891 = vmatpush1.msra.mxu0 0.0
    %892 = vmatprep.subr.mxu0 0.0
    %893 = vmatpush1.msra.mxu0 0.0
    %894 = vmatprep.subr.mxu0 0.0
    %895 = vmatpush1.msra.mxu0 0.0
    %896 = vmatprep.subr.mxu0 0.0
    %897 = vmatpush1.msra.mxu0 0.0
    %898 = vmatprep.subr.mxu0 0.0
    %899 = vmatpush1.msra.mxu0 0.0
    %900 = vmatprep.subr.mxu0 0.0
    %901 = vmatpush1.msra.mxu0 0.0
    %902 = vmatprep.subr.mxu0 0.0
    %903 = vmatpush1.msra.mxu0 0.0
    %904 = vmatprep.mubr.f32.mxu0 0.0
    %v905 = vand.u32 %v523, 4294901760
    %906 = vmatmul.mubr.f32.gmra.mrb[0].mxu0 %v905
    %v907 = vpop.f32.mrb[0].mxu0
    %v908 = vadd.f32 %v831, %v907
    %v909 = vpop.f32.mrb[0].mxu0
    %910 = vdwg.mxu0
    %911 = vmatprep.subr.mxu0 0.0
    %v912 = vand.u32 %v25, 4294901760
    %913 = vmatpush1.msra.mxu0 %v912
    %914 = vmatprep.subr.mxu0 0.0
    %v915 = vand.u32 %v26, 4294901760
    %916 = vmatpush1.msra.mxu0 %v915
    %917 = vmatprep.subr.mxu0 0.0
    %918 = vmatpush1.msra.mxu0 0.0
    %919 = vmatprep.subr.mxu0 0.0
    %920 = vmatpush1.msra.mxu0 0.0
    %921 = vmatprep.subr.mxu0 0.0
    %922 = vmatpush1.msra.mxu0 0.0
    %923 = vmatprep.subr.mxu0 0.0
    %924 = vmatpush1.msra.mxu0 0.0
    %925 = vmatprep.subr.mxu0 0.0
    %926 = vmatpush1.msra.mxu0 0.0
    %927 = vmatprep.subr.mxu0 0.0
    %928 = vmatpush1.msra.mxu0 0.0
    %929 = vmatprep.subr.mxu0 0.0
    %930 = vmatpush1.msra.mxu0 0.0
    %931 = vmatprep.subr.mxu0 0.0
    %932 = vmatpush1.msra.mxu0 0.0
    %933 = vmatprep.subr.mxu0 0.0
    %934 = vmatpush1.msra.mxu0 0.0
    %935 = vmatprep.subr.mxu0 0.0
    %936 = vmatpush1.msra.mxu0 0.0
    %937 = vmatprep.subr.mxu0 0.0
    %938 = vmatpush1.msra.mxu0 0.0
    %939 = vmatprep.subr.mxu0 0.0
    %940 = vmatpush1.msra.mxu0 0.0
    %941 = vmatprep.subr.mxu0 0.0
    %942 = vmatpush1.msra.mxu0 0.0
    %943 = vmatprep.subr.mxu0 0.0
    %944 = vmatpush1.msra.mxu0 0.0
    %945 = vmatprep.subr.mxu0 0.0
    %946 = vmatpush1.msra.mxu0 0.0
    %947 = vmatprep.subr.mxu0 0.0
    %948 = vmatpush1.msra.mxu0 0.0
    %949 = vmatprep.subr.mxu0 0.0
    %950 = vmatpush1.msra.mxu0 0.0
    %951 = vmatprep.subr.mxu0 0.0
    %952 = vmatpush1.msra.mxu0 0.0
    %953 = vmatprep.subr.mxu0 0.0
    %954 = vmatpush1.msra.mxu0 0.0
    %955 = vmatprep.subr.mxu0 0.0
    %956 = vmatpush1.msra.mxu0 0.0
    %957 = vmatprep.subr.mxu0 0.0
    %958 = vmatpush1.msra.mxu0 0.0
    %959 = vmatprep.subr.mxu0 0.0
    %960 = vmatpush1.msra.mxu0 0.0
    %961 = vmatprep.subr.mxu0 0.0
    %962 = vmatpush1.msra.mxu0 0.0
    %963 = vmatprep.subr.mxu0 0.0
    %964 = vmatpush1.msra.mxu0 0.0
    %965 = vmatprep.subr.mxu0 0.0
    %966 = vmatpush1.msra.mxu0 0.0
    %967 = vmatprep.subr.mxu0 0.0
    %968 = vmatpush1.msra.mxu0 0.0
    %969 = vmatprep.subr.mxu0 0.0
    %970 = vmatpush1.msra.mxu0 0.0
    %971 = vmatprep.subr.mxu0 0.0
    %972 = vmatpush1.msra.mxu0 0.0
    %973 = vmatprep.subr.mxu0 0.0
    %974 = vmatpush1.msra.mxu0 0.0
    %975 = vmatprep.subr.mxu0 0.0
    %976 = vmatpush1.msra.mxu0 0.0
    %977 = vmatprep.mubr.f32.mxu0 0.0
    %v978 = vand.u32 %v523, 4294901760
    %979 = vmatmul.mubr.f32.gmra.mrb[0].mxu0 %v978
    %v980 = vpop.f32.mrb[0].mxu0
    %v981 = vadd.f32 %v908, %v980
    %v982 = vpop.f32.mrb[0].mxu0
    %983 = vdwg.mxu0
    %v984 = vld [vmem:[%s2] sm:$0xff]
    %v985 = vld [vmem:[%s3] sm:$0xff]
    %v986 = vadd.f32 %v984, %v985
    %v987 = vld [vmem:[%s4 + $0x30] sm:$0xff]
    %v988 = vld [vmem:[%s4 + $0x38] sm:$0xff]
    %v990 = vsel %vm521, %v986, 0
    %992 = vmatprep.subr.mxu0 0.0
    %v993 = vand.u32 %v987, 4294901760
    %994 = vmatpush1.msra.mxu0 %v993
    %995 = vmatprep.subr.mxu0 0.0
    %v996 = vand.u32 %v988, 4294901760
    %997 = vmatpush1.msra.mxu0 %v996
    %998 = vmatprep.subr.mxu0 0.0
    %999 = vmatpush1.msra.mxu0 0.0
    %1000 = vmatprep.subr.mxu0 0.0
    %1001 = vmatpush1.msra.mxu0 0.0
    %1002 = vmatprep.subr.mxu0 0.0
    %1003 = vmatpush1.msra.mxu0 0.0
    %1004 = vmatprep.subr.mxu0 0.0
    %1005 = vmatpush1.msra.mxu0 0.0
    %1006 = vmatprep.subr.mxu0 0.0
    %1007 = vmatpush1.msra.mxu0 0.0
    %1008 = vmatprep.subr.mxu0 0.0
    %1009 = vmatpush1.msra.mxu0 0.0
    %1010 = vmatprep.subr.mxu0 0.0
    %1011 = vmatpush1.msra.mxu0 0.0
    %1012 = vmatprep.subr.mxu0 0.0
    %1013 = vmatpush1.msra.mxu0 0.0
    %1014 = vmatprep.subr.mxu0 0.0
    %1015 = vmatpush1.msra.mxu0 0.0
    %1016 = vmatprep.subr.mxu0 0.0
    %1017 = vmatpush1.msra.mxu0 0.0
    %1018 = vmatprep.subr.mxu0 0.0
    %1019 = vmatpush1.msra.mxu0 0.0
    %1020 = vmatprep.subr.mxu0 0.0
    %1021 = vmatpush1.msra.mxu0 0.0
    %1022 = vmatprep.subr.mxu0 0.0
    %1023 = vmatpush1.msra.mxu0 0.0
    %1024 = vmatprep.subr.mxu0 0.0
    %1025 = vmatpush1.msra.mxu0 0.0
    %1026 = vmatprep.subr.mxu0 0.0
    %1027 = vmatpush1.msra.mxu0 0.0
    %1028 = vmatprep.subr.mxu0 0.0
    %1029 = vmatpush1.msra.mxu0 0.0
    %1030 = vmatprep.subr.mxu0 0.0
    %1031 = vmatpush1.msra.mxu0 0.0
    %1032 = vmatprep.subr.mxu0 0.0
    %1033 = vmatpush1.msra.mxu0 0.0
    %1034 = vmatprep.subr.mxu0 0.0
    %1035 = vmatpush1.msra.mxu0 0.0
    %1036 = vmatprep.subr.mxu0 0.0
    %1037 = vmatpush1.msra.mxu0 0.0
    %1038 = vmatprep.subr.mxu0 0.0
    %1039 = vmatpush1.msra.mxu0 0.0
    %1040 = vmatprep.subr.mxu0 0.0
    %1041 = vmatpush1.msra.mxu0 0.0
    %1042 = vmatprep.subr.mxu0 0.0
    %1043 = vmatpush1.msra.mxu0 0.0
    %1044 = vmatprep.subr.mxu0 0.0
    %1045 = vmatpush1.msra.mxu0 0.0
    %1046 = vmatprep.subr.mxu0 0.0
    %1047 = vmatpush1.msra.mxu0 0.0
    %1048 = vmatprep.subr.mxu0 0.0
    %1049 = vmatpush1.msra.mxu0 0.0
    %1050 = vmatprep.subr.mxu0 0.0
    %1051 = vmatpush1.msra.mxu0 0.0
    %1052 = vmatprep.subr.mxu0 0.0
    %1053 = vmatpush1.msra.mxu0 0.0
    %1054 = vmatprep.subr.mxu0 0.0
    %1055 = vmatpush1.msra.mxu0 0.0
    %1056 = vmatprep.subr.mxu0 0.0
    %1057 = vmatpush1.msra.mxu0 0.0
    %1058 = vmatprep.mubr.f32.mxu0 0.0
    %v1059 = vand.u32 %v990, 4294901760
    %v1060 = vsub.f32 %v990, %v1059
    %v1061 = vand.u32 %v1060, 4294901760
    %v1062 = vsub.f32 %v1060, %v1061
    %v1063 = vand.u32 %v1062, 4294901760
    %1064 = vmatmul.mubr.f32.gmra.mrb[0].mxu0 %v1063
    %v1065 = vpop.f32.mrb[0].mxu0
    %v1066 = vadd.f32 0.0, %v1065
    %v1067 = vpop.f32.mrb[0].mxu0
    %1068 = vdwg.mxu0
    %1069 = vmatprep.subr.mxu0 0.0
    %v1070 = vand.u32 %v987, 4294901760
    %v1071 = vsub.f32 %v987, %v1070
    %v1072 = vand.u32 %v1071, 4294901760
    %v1073 = vsub.f32 %v1071, %v1072
    %v1074 = vand.u32 %v1073, 4294901760
    %1075 = vmatpush1.msra.mxu0 %v1074
    %1076 = vmatprep.subr.mxu0 0.0
    %v1077 = vand.u32 %v988, 4294901760
    %v1078 = vsub.f32 %v988, %v1077
    %v1079 = vand.u32 %v1078, 4294901760
    %v1080 = vsub.f32 %v1078, %v1079
    %v1081 = vand.u32 %v1080, 4294901760
    %1082 = vmatpush1.msra.mxu0 %v1081
    %1083 = vmatprep.subr.mxu0 0.0
    %1084 = vmatpush1.msra.mxu0 0.0
    %1085 = vmatprep.subr.mxu0 0.0
    %1086 = vmatpush1.msra.mxu0 0.0
    %1087 = vmatprep.subr.mxu0 0.0
    %1088 = vmatpush1.msra.mxu0 0.0
    %1089 = vmatprep.subr.mxu0 0.0
    %1090 = vmatpush1.msra.mxu0 0.0
    %1091 = vmatprep.subr.mxu0 0.0
    %1092 = vmatpush1.msra.mxu0 0.0
    %1093 = vmatprep.subr.mxu0 0.0
    %1094 = vmatpush1.msra.mxu0 0.0
    %1095 = vmatprep.subr.mxu0 0.0
    %1096 = vmatpush1.msra.mxu0 0.0
    %1097 = vmatprep.subr.mxu0 0.0
    %1098 = vmatpush1.msra.mxu0 0.0
    %1099 = vmatprep.subr.mxu0 0.0
    %1100 = vmatpush1.msra.mxu0 0.0
    %1101 = vmatprep.subr.mxu0 0.0
    %1102 = vmatpush1.msra.mxu0 0.0
    %1103 = vmatprep.subr.mxu0 0.0
    %1104 = vmatpush1.msra.mxu0 0.0
    %1105 = vmatprep.subr.mxu0 0.0
    %1106 = vmatpush1.msra.mxu0 0.0
    %1107 = vmatprep.subr.mxu0 0.0
    %1108 = vmatpush1.msra.mxu0 0.0
    %1109 = vmatprep.subr.mxu0 0.0
    %1110 = vmatpush1.msra.mxu0 0.0
    %1111 = vmatprep.subr.mxu0 0.0
    %1112 = vmatpush1.msra.mxu0 0.0
    %1113 = vmatprep.subr.mxu0 0.0
    %1114 = vmatpush1.msra.mxu0 0.0
    %1115 = vmatprep.subr.mxu0 0.0
    %1116 = vmatpush1.msra.mxu0 0.0
    %1117 = vmatprep.subr.mxu0 0.0
    %1118 = vmatpush1.msra.mxu0 0.0
    %1119 = vmatprep.subr.mxu0 0.0
    %1120 = vmatpush1.msra.mxu0 0.0
    %1121 = vmatprep.subr.mxu0 0.0
    %1122 = vmatpush1.msra.mxu0 0.0
    %1123 = vmatprep.subr.mxu0 0.0
    %1124 = vmatpush1.msra.mxu0 0.0
    %1125 = vmatprep.subr.mxu0 0.0
    %1126 = vmatpush1.msra.mxu0 0.0
    %1127 = vmatprep.subr.mxu0 0.0
    %1128 = vmatpush1.msra.mxu0 0.0
    %1129 = vmatprep.subr.mxu0 0.0
    %1130 = vmatpush1.msra.mxu0 0.0
    %1131 = vmatprep.subr.mxu0 0.0
    %1132 = vmatpush1.msra.mxu0 0.0
    %1133 = vmatprep.subr.mxu0 0.0
    %1134 = vmatpush1.msra.mxu0 0.0
    %1135 = vmatprep.subr.mxu0 0.0
    %1136 = vmatpush1.msra.mxu0 0.0
    %1137 = vmatprep.subr.mxu0 0.0
    %1138 = vmatpush1.msra.mxu0 0.0
    %1139 = vmatprep.subr.mxu0 0.0
    %1140 = vmatpush1.msra.mxu0 0.0
    %1141 = vmatprep.subr.mxu0 0.0
    %1142 = vmatpush1.msra.mxu0 0.0
    %1143 = vmatprep.mubr.f32.mxu0 0.0
    %v1144 = vand.u32 %v990, 4294901760
    %1145 = vmatmul.mubr.f32.gmra.mrb[0].mxu0 %v1144
    %v1146 = vpop.f32.mrb[0].mxu0
    %v1147 = vadd.f32 %v1066, %v1146
    %v1148 = vpop.f32.mrb[0].mxu0
    %1149 = vdwg.mxu0
    %1150 = vmatprep.subr.mxu0 0.0
    %v1151 = vand.u32 %v987, 4294901760
    %v1152 = vsub.f32 %v987, %v1151
    %1153 = vmatpush1.msra.mxu0 %v1152
    %1154 = vmatprep.subr.mxu0 0.0
    %v1155 = vand.u32 %v988, 4294901760
    %v1156 = vsub.f32 %v988, %v1155
    %1157 = vmatpush1.msra.mxu0 %v1156
    %1158 = vmatprep.subr.mxu0 0.0
    %1159 = vmatpush1.msra.mxu0 0.0
    %1160 = vmatprep.subr.mxu0 0.0
    %1161 = vmatpush1.msra.mxu0 0.0
    %1162 = vmatprep.subr.mxu0 0.0
    %1163 = vmatpush1.msra.mxu0 0.0
    %1164 = vmatprep.subr.mxu0 0.0
    %1165 = vmatpush1.msra.mxu0 0.0
    %1166 = vmatprep.subr.mxu0 0.0
    %1167 = vmatpush1.msra.mxu0 0.0
    %1168 = vmatprep.subr.mxu0 0.0
    %1169 = vmatpush1.msra.mxu0 0.0
    %1170 = vmatprep.subr.mxu0 0.0
    %1171 = vmatpush1.msra.mxu0 0.0
    %1172 = vmatprep.subr.mxu0 0.0
    %1173 = vmatpush1.msra.mxu0 0.0
    %1174 = vmatprep.subr.mxu0 0.0
    %1175 = vmatpush1.msra.mxu0 0.0
    %1176 = vmatprep.subr.mxu0 0.0
    %1177 = vmatpush1.msra.mxu0 0.0
    %1178 = vmatprep.subr.mxu0 0.0
    %1179 = vmatpush1.msra.mxu0 0.0
    %1180 = vmatprep.subr.mxu0 0.0
    %1181 = vmatpush1.msra.mxu0 0.0
    %1182 = vmatprep.subr.mxu0 0.0
    %1183 = vmatpush1.msra.mxu0 0.0
    %1184 = vmatprep.subr.mxu0 0.0
    %1185 = vmatpush1.msra.mxu0 0.0
    %1186 = vmatprep.subr.mxu0 0.0
    %1187 = vmatpush1.msra.mxu0 0.0
    %1188 = vmatprep.subr.mxu0 0.0
    %1189 = vmatpush1.msra.mxu0 0.0
    %1190 = vmatprep.subr.mxu0 0.0
    %1191 = vmatpush1.msra.mxu0 0.0
    %1192 = vmatprep.subr.mxu0 0.0
    %1193 = vmatpush1.msra.mxu0 0.0
    %1194 = vmatprep.subr.mxu0 0.0
    %1195 = vmatpush1.msra.mxu0 0.0
    %1196 = vmatprep.subr.mxu0 0.0
    %1197 = vmatpush1.msra.mxu0 0.0
    %1198 = vmatprep.subr.mxu0 0.0
    %1199 = vmatpush1.msra.mxu0 0.0
    %1200 = vmatprep.subr.mxu0 0.0
    %1201 = vmatpush1.msra.mxu0 0.0
    %1202 = vmatprep.subr.mxu0 0.0
    %1203 = vmatpush1.msra.mxu0 0.0
    %1204 = vmatprep.subr.mxu0 0.0
    %1205 = vmatpush1.msra.mxu0 0.0
    %1206 = vmatprep.subr.mxu0 0.0
    %1207 = vmatpush1.msra.mxu0 0.0
    %1208 = vmatprep.subr.mxu0 0.0
    %1209 = vmatpush1.msra.mxu0 0.0
    %1210 = vmatprep.subr.mxu0 0.0
    %1211 = vmatpush1.msra.mxu0 0.0
    %1212 = vmatprep.subr.mxu0 0.0
    %1213 = vmatpush1.msra.mxu0 0.0
    %1214 = vmatprep.subr.mxu0 0.0
    %1215 = vmatpush1.msra.mxu0 0.0
    %1216 = vmatprep.subr.mxu0 0.0
    %1217 = vmatpush1.msra.mxu0 0.0
    %1218 = vmatprep.mubr.f32.mxu0 0.0
    %v1219 = vand.u32 %v990, 4294901760
    %v1220 = vsub.f32 %v990, %v1219
    %1221 = vmatmul.mubr.f32.gmra.mrb[0].mxu0 %v1220
    %v1222 = vpop.f32.mrb[0].mxu0
    %v1223 = vadd.f32 %v1147, %v1222
    %v1224 = vpop.f32.mrb[0].mxu0
    %1225 = vdwg.mxu0
    %1226 = vmatprep.subr.mxu0 0.0
    %v1227 = vand.u32 %v987, 4294901760
    %1228 = vmatpush1.msra.mxu0 %v1227
    %1229 = vmatprep.subr.mxu0 0.0
    %v1230 = vand.u32 %v988, 4294901760
    %1231 = vmatpush1.msra.mxu0 %v1230
    %1232 = vmatprep.subr.mxu0 0.0
    %1233 = vmatpush1.msra.mxu0 0.0
    %1234 = vmatprep.subr.mxu0 0.0
    %1235 = vmatpush1.msra.mxu0 0.0
    %1236 = vmatprep.subr.mxu0 0.0
    %1237 = vmatpush1.msra.mxu0 0.0
    %1238 = vmatprep.subr.mxu0 0.0
    %1239 = vmatpush1.msra.mxu0 0.0
    %1240 = vmatprep.subr.mxu0 0.0
    %1241 = vmatpush1.msra.mxu0 0.0
    %1242 = vmatprep.subr.mxu0 0.0
    %1243 = vmatpush1.msra.mxu0 0.0
    %1244 = vmatprep.subr.mxu0 0.0
    %1245 = vmatpush1.msra.mxu0 0.0
    %1246 = vmatprep.subr.mxu0 0.0
    %1247 = vmatpush1.msra.mxu0 0.0
    %1248 = vmatprep.subr.mxu0 0.0
    %1249 = vmatpush1.msra.mxu0 0.0
    %1250 = vmatprep.subr.mxu0 0.0
    %1251 = vmatpush1.msra.mxu0 0.0
    %1252 = vmatprep.subr.mxu0 0.0
    %1253 = vmatpush1.msra.mxu0 0.0
    %1254 = vmatprep.subr.mxu0 0.0
    %1255 = vmatpush1.msra.mxu0 0.0
    %1256 = vmatprep.subr.mxu0 0.0
    %1257 = vmatpush1.msra.mxu0 0.0
    %1258 = vmatprep.subr.mxu0 0.0
    %1259 = vmatpush1.msra.mxu0 0.0
    %1260 = vmatprep.subr.mxu0 0.0
    %1261 = vmatpush1.msra.mxu0 0.0
    %1262 = vmatprep.subr.mxu0 0.0
    %1263 = vmatpush1.msra.mxu0 0.0
    %1264 = vmatprep.subr.mxu0 0.0
    %1265 = vmatpush1.msra.mxu0 0.0
    %1266 = vmatprep.subr.mxu0 0.0
    %1267 = vmatpush1.msra.mxu0 0.0
    %1268 = vmatprep.subr.mxu0 0.0
    %1269 = vmatpush1.msra.mxu0 0.0
    %1270 = vmatprep.subr.mxu0 0.0
    %1271 = vmatpush1.msra.mxu0 0.0
    %1272 = vmatprep.subr.mxu0 0.0
    %1273 = vmatpush1.msra.mxu0 0.0
    %1274 = vmatprep.subr.mxu0 0.0
    %1275 = vmatpush1.msra.mxu0 0.0
    %1276 = vmatprep.subr.mxu0 0.0
    %1277 = vmatpush1.msra.mxu0 0.0
    %1278 = vmatprep.subr.mxu0 0.0
    %1279 = vmatpush1.msra.mxu0 0.0
    %1280 = vmatprep.subr.mxu0 0.0
    %1281 = vmatpush1.msra.mxu0 0.0
    %1282 = vmatprep.subr.mxu0 0.0
    %1283 = vmatpush1.msra.mxu0 0.0
    %1284 = vmatprep.subr.mxu0 0.0
    %1285 = vmatpush1.msra.mxu0 0.0
    %1286 = vmatprep.subr.mxu0 0.0
    %1287 = vmatpush1.msra.mxu0 0.0
    %1288 = vmatprep.subr.mxu0 0.0
    %1289 = vmatpush1.msra.mxu0 0.0
    %1290 = vmatprep.subr.mxu0 0.0
    %1291 = vmatpush1.msra.mxu0 0.0
    %1292 = vmatprep.mubr.f32.mxu0 0.0
    %v1293 = vand.u32 %v990, 4294901760
    %v1294 = vsub.f32 %v990, %v1293
    %v1295 = vand.u32 %v1294, 4294901760
    %1296 = vmatmul.mubr.f32.gmra.mrb[0].mxu0 %v1295
    %v1297 = vpop.f32.mrb[0].mxu0
    %v1298 = vadd.f32 %v1223, %v1297
    %v1299 = vpop.f32.mrb[0].mxu0
    %1300 = vdwg.mxu0
    %1301 = vmatprep.subr.mxu0 0.0
    %v1302 = vand.u32 %v987, 4294901760
    %v1303 = vsub.f32 %v987, %v1302
    %v1304 = vand.u32 %v1303, 4294901760
    %1305 = vmatpush1.msra.mxu0 %v1304
    %1306 = vmatprep.subr.mxu0 0.0
    %v1307 = vand.u32 %v988, 4294901760
    %v1308 = vsub.f32 %v988, %v1307
    %v1309 = vand.u32 %v1308, 4294901760
    %1310 = vmatpush1.msra.mxu0 %v1309
    %1311 = vmatprep.subr.mxu0 0.0
    %1312 = vmatpush1.msra.mxu0 0.0
    %1313 = vmatprep.subr.mxu0 0.0
    %1314 = vmatpush1.msra.mxu0 0.0
    %1315 = vmatprep.subr.mxu0 0.0
    %1316 = vmatpush1.msra.mxu0 0.0
    %1317 = vmatprep.subr.mxu0 0.0
    %1318 = vmatpush1.msra.mxu0 0.0
    %1319 = vmatprep.subr.mxu0 0.0
    %1320 = vmatpush1.msra.mxu0 0.0
    %1321 = vmatprep.subr.mxu0 0.0
    %1322 = vmatpush1.msra.mxu0 0.0
    %1323 = vmatprep.subr.mxu0 0.0
    %1324 = vmatpush1.msra.mxu0 0.0
    %1325 = vmatprep.subr.mxu0 0.0
    %1326 = vmatpush1.msra.mxu0 0.0
    %1327 = vmatprep.subr.mxu0 0.0
    %1328 = vmatpush1.msra.mxu0 0.0
    %1329 = vmatprep.subr.mxu0 0.0
    %1330 = vmatpush1.msra.mxu0 0.0
    %1331 = vmatprep.subr.mxu0 0.0
    %1332 = vmatpush1.msra.mxu0 0.0
    %1333 = vmatprep.subr.mxu0 0.0
    %1334 = vmatpush1.msra.mxu0 0.0
    %1335 = vmatprep.subr.mxu0 0.0
    %1336 = vmatpush1.msra.mxu0 0.0
    %1337 = vmatprep.subr.mxu0 0.0
    %1338 = vmatpush1.msra.mxu0 0.0
    %1339 = vmatprep.subr.mxu0 0.0
    %1340 = vmatpush1.msra.mxu0 0.0
    %1341 = vmatprep.subr.mxu0 0.0
    %1342 = vmatpush1.msra.mxu0 0.0
    %1343 = vmatprep.subr.mxu0 0.0
    %1344 = vmatpush1.msra.mxu0 0.0
    %1345 = vmatprep.subr.mxu0 0.0
    %1346 = vmatpush1.msra.mxu0 0.0
    %1347 = vmatprep.subr.mxu0 0.0
    %1348 = vmatpush1.msra.mxu0 0.0
    %1349 = vmatprep.subr.mxu0 0.0
    %1350 = vmatpush1.msra.mxu0 0.0
    %1351 = vmatprep.subr.mxu0 0.0
    %1352 = vmatpush1.msra.mxu0 0.0
    %1353 = vmatprep.subr.mxu0 0.0
    %1354 = vmatpush1.msra.mxu0 0.0
    %1355 = vmatprep.subr.mxu0 0.0
    %1356 = vmatpush1.msra.mxu0 0.0
    %1357 = vmatprep.subr.mxu0 0.0
    %1358 = vmatpush1.msra.mxu0 0.0
    %1359 = vmatprep.subr.mxu0 0.0
    %1360 = vmatpush1.msra.mxu0 0.0
    %1361 = vmatprep.subr.mxu0 0.0
    %1362 = vmatpush1.msra.mxu0 0.0
    %1363 = vmatprep.subr.mxu0 0.0
    %1364 = vmatpush1.msra.mxu0 0.0
    %1365 = vmatprep.subr.mxu0 0.0
    %1366 = vmatpush1.msra.mxu0 0.0
    %1367 = vmatprep.subr.mxu0 0.0
    %1368 = vmatpush1.msra.mxu0 0.0
    %1369 = vmatprep.subr.mxu0 0.0
    %1370 = vmatpush1.msra.mxu0 0.0
    %1371 = vmatprep.mubr.f32.mxu0 0.0
    %v1372 = vand.u32 %v990, 4294901760
    %1373 = vmatmul.mubr.f32.gmra.mrb[0].mxu0 %v1372
    %v1374 = vpop.f32.mrb[0].mxu0
    %v1375 = vadd.f32 %v1298, %v1374
    %v1376 = vpop.f32.mrb[0].mxu0
    %1377 = vdwg.mxu0
    %1378 = vmatprep.subr.mxu0 0.0
    %v1379 = vand.u32 %v987, 4294901760
    %1380 = vmatpush1.msra.mxu0 %v1379
    %1381 = vmatprep.subr.mxu0 0.0
    %v1382 = vand.u32 %v988, 4294901760
    %1383 = vmatpush1.msra.mxu0 %v1382
    %1384 = vmatprep.subr.mxu0 0.0
    %1385 = vmatpush1.msra.mxu0 0.0
    %1386 = vmatprep.subr.mxu0 0.0
    %1387 = vmatpush1.msra.mxu0 0.0
    %1388 = vmatprep.subr.mxu0 0.0
    %1389 = vmatpush1.msra.mxu0 0.0
    %1390 = vmatprep.subr.mxu0 0.0
    %1391 = vmatpush1.msra.mxu0 0.0
    %1392 = vmatprep.subr.mxu0 0.0
    %1393 = vmatpush1.msra.mxu0 0.0
    %1394 = vmatprep.subr.mxu0 0.0
    %1395 = vmatpush1.msra.mxu0 0.0
    %1396 = vmatprep.subr.mxu0 0.0
    %1397 = vmatpush1.msra.mxu0 0.0
    %1398 = vmatprep.subr.mxu0 0.0
    %1399 = vmatpush1.msra.mxu0 0.0
    %1400 = vmatprep.subr.mxu0 0.0
    %1401 = vmatpush1.msra.mxu0 0.0
    %1402 = vmatprep.subr.mxu0 0.0
    %1403 = vmatpush1.msra.mxu0 0.0
    %1404 = vmatprep.subr.mxu0 0.0
    %1405 = vmatpush1.msra.mxu0 0.0
    %1406 = vmatprep.subr.mxu0 0.0
    %1407 = vmatpush1.msra.mxu0 0.0
    %1408 = vmatprep.subr.mxu0 0.0
    %1409 = vmatpush1.msra.mxu0 0.0
    %1410 = vmatprep.subr.mxu0 0.0
    %1411 = vmatpush1.msra.mxu0 0.0
    %1412 = vmatprep.subr.mxu0 0.0
    %1413 = vmatpush1.msra.mxu0 0.0
    %1414 = vmatprep.subr.mxu0 0.0
    %1415 = vmatpush1.msra.mxu0 0.0
    %1416 = vmatprep.subr.mxu0 0.0
    %1417 = vmatpush1.msra.mxu0 0.0
    %1418 = vmatprep.subr.mxu0 0.0
    %1419 = vmatpush1.msra.mxu0 0.0
    %1420 = vmatprep.subr.mxu0 0.0
    %1421 = vmatpush1.msra.mxu0 0.0
    %1422 = vmatprep.subr.mxu0 0.0
    %1423 = vmatpush1.msra.mxu0 0.0
    %1424 = vmatprep.subr.mxu0 0.0
    %1425 = vmatpush1.msra.mxu0 0.0
    %1426 = vmatprep.subr.mxu0 0.0
    %1427 = vmatpush1.msra.mxu0 0.0
    %1428 = vmatprep.subr.mxu0 0.0
    %1429 = vmatpush1.msra.mxu0 0.0
    %1430 = vmatprep.subr.mxu0 0.0
    %1431 = vmatpush1.msra.mxu0 0.0
    %1432 = vmatprep.subr.mxu0 0.0
    %1433 = vmatpush1.msra.mxu0 0.0
    %1434 = vmatprep.subr.mxu0 0.0
    %1435 = vmatpush1.msra.mxu0 0.0
    %1436 = vmatprep.subr.mxu0 0.0
    %1437 = vmatpush1.msra.mxu0 0.0
    %1438 = vmatprep.subr.mxu0 0.0
    %1439 = vmatpush1.msra.mxu0 0.0
    %1440 = vmatprep.subr.mxu0 0.0
    %1441 = vmatpush1.msra.mxu0 0.0
    %1442 = vmatprep.subr.mxu0 0.0
    %1443 = vmatpush1.msra.mxu0 0.0
    %1444 = vmatprep.mubr.f32.mxu0 0.0
    %v1445 = vand.u32 %v990, 4294901760
    %1446 = vmatmul.mubr.f32.gmra.mrb[0].mxu0 %v1445
    %v1447 = vpop.f32.mrb[0].mxu0
    %v1448 = vadd.f32 %v1375, %v1447
    %v1449 = vpop.f32.mrb[0].mxu0
    %1450 = vdwg.mxu0
    %v1451 = vadd.f32 %v981, %v1448
    %v1452 = vld [vmem:[%s5] sm:$0x1]
    %v1454 = vlaneseq
    %v1455 = vshrl.u32 %v1454, 7
    %v1456 = vsub.s32 0, %v1455
    %v1457 = vrot.slane %v1452, %v1456
    %v1459 = vadd.f32 %v1451, %v1457
    %v1460 = vmax.f32 %v1459, 0.0
    %1461 = vst.msk [vmem:[#allocation2] sm:$0xff] %vm32, %v1460
    // Predicated region
    $region26: #{mixing_layer_concat.1} parent=1 // pred_check
      _
    $region27: #{mixing_layer_concat.1} parent=1 // pred_check_branch
      %1463 = sbr.rel (0) target = $region29
    $region28: #{mixing_layer_concat.1} parent=1 // pred_region
      %s1465 = ssub.s32 128, 128
      %1466 = vsyncadd [#allocation3], %s1465
      %s1468 = sshll.u32 [#allocation2], 4
      %s1469 = int_to_ptr.vmem [resolvable:$true] %s1468
      %1471 = dma.vmem_to_hbm [thread:$0]  %s1469, 128, %s6, [#allocation3]
    $region29: #{mixing_layer_concat.1} parent=1 // pred_fallthru
      _
    // Predicated region
    $region30: #{mixing_layer_concat.1} parent=1 // pred_check
      _
    $region31: #{mixing_layer_concat.1} parent=1 // pred_check_branch
      %1473 = sbr.rel (0) target = $region33
    $region32: #{mixing_layer_concat.1} parent=1 // pred_region
      %1474 = dma.done [#allocation3], 128
    $region33: #{mixing_layer_concat.1} parent=1 // pred_fallthru
      _
    %1475 = vsyncpa [#allocation3], 1

</llo_original>
